<compile_context>
chip_gen: v7x
topology: tpu7x:2x2x1
jax: 0.10.0
libtpu: 0.0.40
codegen_flags: <defaults>
</compile_context>

<pallas_src>
import functools

import jax
import jax.numpy as jnp
from jax.experimental import pallas as pl
from jax.experimental.pallas import tpu as pltpu


def _round_up(x, m):
    return ((x + m - 1) // m) * m


# ---------------------------------------------------------------------------
# Spatial warper (the `dsp_warper` ctor arg): backward bilinear warp of `x`
# by displacement `flow`, zero padding for out-of-bounds samples.
# flow[:, 0] = dx (horizontal / W axis), flow[:, 1] = dy (vertical / H axis).
# TODO(synk): bilinear gather has no clean Pallas TPU equivalent; kept in JAX.
# TODO(synk): longer term, fuse this warp (or its 4-corner blend) into the
# kernel via pl.ANY HBM refs + manual DMA to avoid materializing the tilde
# fields in HBM and re-reading them.
# ---------------------------------------------------------------------------
def flow_warp(x, flow):
    N, C, H, W = x.shape
    ys, xs = jnp.meshgrid(
        jnp.arange(H, dtype=jnp.float32),
        jnp.arange(W, dtype=jnp.float32),
        indexing="ij",
    )
    gx = xs[None] + flow[:, 0]  # (N, H, W)
    gy = ys[None] + flow[:, 1]  # (N, H, W)

    x0 = jnp.floor(gx)
    y0 = jnp.floor(gy)
    x1 = x0 + 1.0
    y1 = y0 + 1.0
    wx1 = gx - x0
    wx0 = 1.0 - wx1
    wy1 = gy - y0
    wy0 = 1.0 - wy1

    def gather(yi, xi):
        valid = (xi >= 0) & (xi < W) & (yi >= 0) & (yi < H)
        xi_c = jnp.clip(xi, 0, W - 1).astype(jnp.int32)
        yi_c = jnp.clip(yi, 0, H - 1).astype(jnp.int32)
        g = jax.vmap(lambda img, yy, xx: img[:, yy, xx])(x, yi_c, xi_c)
        return g * valid[:, None, :, :].astype(x.dtype)

    g00 = gather(y0, x0)
    g01 = gather(y0, x1)
    g10 = gather(y1, x0)
    g11 = gather(y1, x1)

    w00 = (wy0 * wx0)[:, None]
    w01 = (wy0 * wx1)[:, None]
    w10 = (wy1 * wx0)[:, None]
    w11 = (wy1 * wx1)[:, None]
    return w00 * g00 + w01 * g01 + w10 * g10 + w11 * g11


# ---------------------------------------------------------------------------
# Pallas kernel: elementwise cross-sanity math + per-lane partial reductions.
# Inputs: eight (rows, 128) f32 per-channel arrays
#   fw_x, fw_y, bw_x, bw_y, tilde_fw_x, tilde_fw_y, tilde_bw_x, tilde_bw_y
# Output block (4, 128) per parallel split:
#   row 0: per-lane sum(A where A>=0), row 1: per-lane count(A>=0)
#   row 2: per-lane sum(B where B>=0), row 3: per-lane count(B>=0)
# ---------------------------------------------------------------------------
def _cross_sanity_kernel(fwx_ref, fwy_ref, bwx_ref, bwy_ref,
                         tfx_ref, tfy_ref, tbx_ref, tby_ref,
                         out_ref, acc_ref,
                         *, alpha, beta, p_valid, rtile, n_inner, need_mask):
    i = pl.program_id(0)   # parallel split (both TensorCores on v7x)
    j = pl.program_id(1)   # sequential streaming tiles within the split

    @pl.when(j == 0)
    def _init():
        acc_ref[...] = jnp.zeros_like(acc_ref)

    fx = fwx_ref[...]
    fy = fwy_ref[...]
    bx = bwx_ref[...]
    by = bwy_ref[...]
    tfx = tfx_ref[...]
    tfy = tfy_ref[...]
    tbx = tbx_ref[...]
    tby = tby_ref[...]

    # Channel reductions are plain VPU adds of dense (rtile, 128) tiles.
    mag_sq_fw = fx * fx + fy * fy + tbx * tbx + tby * tby
    mag_sq_bw = bx * bx + by * by + tfx * tfx + tfy * tfy
    dfx = fx + tbx
    dfy = fy + tby
    dbx = bx + tfx
    dby = by + tfy
    flow_sq_diff_fw = dfx * dfx + dfy * dfy
    flow_sq_diff_bw = dbx * dbx + dby * dby

    A = flow_sq_diff_fw - (alpha * mag_sq_fw + beta)
    B = flow_sq_diff_bw - (alpha * mag_sq_bw + beta)

    a_pos = A >= 0.0
    b_pos = B >= 0.0
    if need_mask:
        # Only emitted when the grid over-covers the real element count; the
        # few extra VPU ops are hidden under the HBM bound.
        row = jax.lax.broadcasted_iota(jnp.int32, (rtile, 128), 0)
        lane = jax.lax.broadcasted_iota(jnp.int32, (rtile, 128), 1)
        blk = i * n_inner + j
        elem = (blk * rtile + row) * 128 + lane
        valid = elem < p_valid
        a_pos = a_pos & valid
        b_pos = b_pos & valid

    # jnp.where (not multiply) so garbage rows of a ragged final block can
    # never inject NaN/Inf into the partial sums.
    a_val = jnp.where(a_pos, A, 0.0)
    b_val = jnp.where(b_pos, B, 0.0)

    # Per-lane accumulation (sublane-axis sum of the block, then VPU add).
    acc_ref[0:1, :] += jnp.sum(a_val, axis=0, keepdims=True)
    acc_ref[1:2, :] += jnp.sum(a_pos.astype(jnp.float32), axis=0, keepdims=True)
    acc_ref[2:3, :] += jnp.sum(b_val, axis=0, keepdims=True)
    acc_ref[3:4, :] += jnp.sum(b_pos.astype(jnp.float32), axis=0, keepdims=True)

    @pl.when(j == n_inner - 1)
    def _finalize():
        out_ref[...] = acc_ref[...]


def cross_sanity_loss(dsp_fw, dsp_bw, alpha, beta, *, rtile_max=1024, nsplit=2):
    """Mirrors CrossSanityLoss.forward(dsp_fw, dsp_bw)."""
    dsp_fw = dsp_fw.astype(jnp.float32)
    dsp_bw = dsp_bw.astype(jnp.float32)

    # spatial_warper(a, b) == warp a by flow b
    tilde_dsp_fw = flow_warp(dsp_fw, dsp_bw)
    tilde_dsp_bw = flow_warp(dsp_bw, dsp_fw)

    N, C, H, W = dsp_fw.shape
    assert C == 2, "displacement fields must have 2 channels"
    P = N * H * W

    # Tiling: rows of 128 lanes; rtile rows per block (multiple of 8),
    # nsplit-way parallel outer axis, n_inner sequential tiles per split.
    # rtile_max=1024 keeps the double-buffered footprint ~8 MiB, safe for
    # v5e's 16 MiB default scoped VMEM (and v6e/v7x).
    R = pl.cdiv(P, 128)
    n_inner = max(1, pl.cdiv(R, nsplit * rtile_max))
    rtile = _round_up(pl.cdiv(R, nsplit * n_inner), 8)
    r_total = nsplit * n_inner * rtile
    p_pad = r_total * 128
    need_mask = (p_pad != P)

    def prep(x, c):
        # Channel slice -> flat stream -> small pad -> (r_total, 128).
        # XLA fuses the slice/pad/reshape into one copy; no full transpose.
        flat = x[:, c].reshape(-1)
        if p_pad != P:
            flat = jnp.pad(flat, (0, p_pad - P))
        return flat.reshape(r_total, 128)

    inputs = [prep(a, c)
              for a in (dsp_fw, dsp_bw, tilde_dsp_fw, tilde_dsp_bw)
              for c in (0, 1)]
    # order: fw_x, fw_y, bw_x, bw_y, tfw_x, tfw_y, tbw_x, tbw_y

    kernel = functools.partial(
        _cross_sanity_kernel,
        alpha=float(alpha), beta=float(beta),
        p_valid=P, rtile=rtile, n_inner=n_inner, need_mask=need_mask)

    in_spec = pl.BlockSpec((rtile, 128), lambda i, j: (i * n_inner + j, 0))
    out_spec = pl.BlockSpec((None, 4, 128), lambda i, j: (i, 0, 0))

    partials = pl.pallas_call(
        kernel,
        out_shape=jax.ShapeDtypeStruct((nsplit, 4, 128), jnp.float32),
        grid_spec=pltpu.PrefetchScalarGridSpec(
            num_scalar_prefetch=0,
            grid=(nsplit, n_inner),
            in_specs=[in_spec] * 8,
            out_specs=out_spec,
            scratch_shapes=[pltpu.VMEM((4, 128), jnp.float32)],
        ),
        compiler_params=pltpu.CompilerParams(
            dimension_semantics=("parallel", "arbitrary")),
    )(*inputs)

    sums = jnp.sum(partials, axis=(0, 2))  # (4,)
    A_mean = sums[0] / (sums[1] + 1e-5)
    B_mean = sums[2] / (sums[3] + 1e-5)
    A_mean = jnp.where(jnp.isnan(A_mean), jnp.float32(1e-5), A_mean)
    B_mean = jnp.where(jnp.isnan(B_mean), jnp.float32(1e-5), B_mean)
    return 0.5 * (A_mean + B_mean)


# ---------------------------------------------------------------------------
# Pure-JAX reference (same math, no Pallas) for a sanity check.
# ---------------------------------------------------------------------------
def cross_sanity_loss_ref(dsp_fw, dsp_bw, alpha, beta):
    tilde_dsp_fw = flow_warp(dsp_fw, dsp_bw)
    tilde_dsp_bw = flow_warp(dsp_bw, dsp_fw)
    mag_sq_fw = jnp.sum(dsp_fw ** 2 + tilde_dsp_bw ** 2, axis=1)
    mag_sq_bw = jnp.sum(dsp_bw ** 2 + tilde_dsp_fw ** 2, axis=1)
    flow_sq_diff_fw = jnp.sum((dsp_fw + tilde_dsp_bw) ** 2, axis=1)
    flow_sq_diff_bw = jnp.sum((dsp_bw + tilde_dsp_fw) ** 2, axis=1)
    A = flow_sq_diff_fw - (alpha * mag_sq_fw + beta)
    B = flow_sq_diff_bw - (alpha * mag_sq_bw + beta)
    A_mask = (A >= 0).astype(jnp.float32)
    B_mask = (B >= 0).astype(jnp.float32)
    A_mean = jnp.sum(A * A_mask) / (jnp.sum(A_mask) + 1e-5)
    B_mean = jnp.sum(B * B_mask) / (jnp.sum(B_mask) + 1e-5)
    A_mean = jnp.where(jnp.isnan(A_mean), 1e-5, A_mean)
    B_mean = jnp.where(jnp.isnan(B_mean), 1e-5, B_mean)
    return 0.5 * (A_mean + B_mean)


if __name__ == "__main__":
    # Small deterministic example: batch=2, 2-channel displacement, 16x16.
    key = jax.random.PRNGKey(0)
    k1, k2 = jax.random.split(key)
    dsp_fw = 2.0 * jax.random.normal(k1, (2, 2, 16, 16), dtype=jnp.float32)
    dsp_bw = 2.0 * jax.random.normal(k2, (2, 2, 16, 16), dtype=jnp.float32)

    alpha, beta = 0.01, 0.5  # module ctor hyperparameters

    loss = cross_sanity_loss(dsp_fw, dsp_bw, alpha, beta)
    loss = jax.block_until_ready(loss)

    ref = jax.block_until_ready(cross_sanity_loss_ref(dsp_fw, dsp_bw, alpha, beta))
    assert jnp.allclose(loss, ref, rtol=1e-4, atol=1e-4), (loss, ref)

    print("KERNEL_OK")
</pallas_src>

<mosaic_0001>
module attributes {stable_mosaic.version = 11 : i64} {
  func.func @_cross_sanity_kernel(%arg0: i32, %arg1: i32, %arg2: memref<8x128xf32, #tpu.memory_space<vmem>>, %arg3: memref<8x128xf32, #tpu.memory_space<vmem>>, %arg4: memref<8x128xf32, #tpu.memory_space<vmem>>, %arg5: memref<8x128xf32, #tpu.memory_space<vmem>>, %arg6: memref<8x128xf32, #tpu.memory_space<vmem>>, %arg7: memref<8x128xf32, #tpu.memory_space<vmem>>, %arg8: memref<8x128xf32, #tpu.memory_space<vmem>>, %arg9: memref<8x128xf32, #tpu.memory_space<vmem>>, %arg10: memref<1x4x128xf32, #tpu.memory_space<vmem>>, %arg11: memref<4x128xf32, #tpu.memory_space<vmem>>) attributes {dimension_semantics = [#tpu.dimension_semantics<parallel>, #tpu.dimension_semantics<arbitrary>], iteration_bounds = array<i64: 2, 1>, scalar_prefetch = 0 : i64, scratch_operands = 1 : i64, tpu.core_type = #tpu.core_type<tc>, window_params = [{transform_indices = @transform_0, window_bounds = array<i64: 8, 128>}, {transform_indices = @transform_1, window_bounds = array<i64: 8, 128>}, {transform_indices = @transform_2, window_bounds = array<i64: 8, 128>}, {transform_indices = @transform_3, window_bounds = array<i64: 8, 128>}, {transform_indices = @transform_4, window_bounds = array<i64: 8, 128>}, {transform_indices = @transform_5, window_bounds = array<i64: 8, 128>}, {transform_indices = @transform_6, window_bounds = array<i64: 8, 128>}, {transform_indices = @transform_7, window_bounds = array<i64: 8, 128>}, {transform_indices = @transform_8, window_bounds = array<i64: 1, 4, 128>}]} {
    %c0_i32 = arith.constant 0 : i32
    %0 = arith.cmpi eq, %arg1, %c0_i32 : i32
    %1 = arith.extui %0 : i1 to i32
    %c0_i32_0 = arith.constant 0 : i32
    %2 = arith.cmpi ne, %1, %c0_i32_0 : i32
    scf.if %2 {
      %cst_42 = arith.constant 0.000000e+00 : f32
      %94 = vector.broadcast %cst_42 : f32 to vector<4x128xf32>
      %c0_43 = arith.constant 0 : index
      %c0_44 = arith.constant 0 : index
      %95 = vector.load %arg11[%c0_43, %c0_44] : memref<4x128xf32, #tpu.memory_space<vmem>>, vector<4x128xf32>
      tpu.vector_store %arg11[%c0_43, %c0_44], %94 {strides = array<i32>} : memref<4x128xf32, #tpu.memory_space<vmem>>, vector<4x128xf32>,
    } else {
    }
    %c0 = arith.constant 0 : index
    %c0_1 = arith.constant 0 : index
    %3 = vector.load %arg2[%c0, %c0_1] : memref<8x128xf32, #tpu.memory_space<vmem>>, vector<8x128xf32>
    %c0_2 = arith.constant 0 : index
    %c0_3 = arith.constant 0 : index
    %4 = vector.load %arg3[%c0_2, %c0_3] : memref<8x128xf32, #tpu.memory_space<vmem>>, vector<8x128xf32>
    %c0_4 = arith.constant 0 : index
    %c0_5 = arith.constant 0 : index
    %5 = vector.load %arg4[%c0_4, %c0_5] : memref<8x128xf32, #tpu.memory_space<vmem>>, vector<8x128xf32>
    %c0_6 = arith.constant 0 : index
    %c0_7 = arith.constant 0 : index
    %6 = vector.load %arg5[%c0_6, %c0_7] : memref<8x128xf32, #tpu.memory_space<vmem>>, vector<8x128xf32>
    %c0_8 = arith.constant 0 : index
    %c0_9 = arith.constant 0 : index
    %7 = vector.load %arg6[%c0_8, %c0_9] : memref<8x128xf32, #tpu.memory_space<vmem>>, vector<8x128xf32>
    %c0_10 = arith.constant 0 : index
    %c0_11 = arith.constant 0 : index
    %8 = vector.load %arg7[%c0_10, %c0_11] : memref<8x128xf32, #tpu.memory_space<vmem>>, vector<8x128xf32>
    %c0_12 = arith.constant 0 : index
    %c0_13 = arith.constant 0 : index
    %9 = vector.load %arg8[%c0_12, %c0_13] : memref<8x128xf32, #tpu.memory_space<vmem>>, vector<8x128xf32>
    %c0_14 = arith.constant 0 : index
    %c0_15 = arith.constant 0 : index
    %10 = vector.load %arg9[%c0_14, %c0_15] : memref<8x128xf32, #tpu.memory_space<vmem>>, vector<8x128xf32>
    %11 = arith.mulf %3, %3 : vector<8x128xf32>
    %12 = arith.mulf %4, %4 : vector<8x128xf32>
    %13 = arith.addf %11, %12 : vector<8x128xf32>
    %14 = arith.mulf %9, %9 : vector<8x128xf32>
    %15 = arith.addf %13, %14 : vector<8x128xf32>
    %16 = arith.mulf %10, %10 : vector<8x128xf32>
    %17 = arith.addf %15, %16 : vector<8x128xf32>
    %18 = arith.mulf %5, %5 : vector<8x128xf32>
    %19 = arith.mulf %6, %6 : vector<8x128xf32>
    %20 = arith.addf %18, %19 : vector<8x128xf32>
    %21 = arith.mulf %7, %7 : vector<8x128xf32>
    %22 = arith.addf %20, %21 : vector<8x128xf32>
    %23 = arith.mulf %8, %8 : vector<8x128xf32>
    %24 = arith.addf %22, %23 : vector<8x128xf32>
    %25 = arith.addf %3, %9 : vector<8x128xf32>
    %26 = arith.addf %4, %10 : vector<8x128xf32>
    %27 = arith.addf %5, %7 : vector<8x128xf32>
    %28 = arith.addf %6, %8 : vector<8x128xf32>
    %29 = arith.mulf %25, %25 : vector<8x128xf32>
    %30 = arith.mulf %26, %26 : vector<8x128xf32>
    %31 = arith.addf %29, %30 : vector<8x128xf32>
    %32 = arith.mulf %27, %27 : vector<8x128xf32>
    %33 = arith.mulf %28, %28 : vector<8x128xf32>
    %34 = arith.addf %32, %33 : vector<8x128xf32>
    %cst = arith.constant 0.00999999977 : f32
    %35 = vector.broadcast %cst : f32 to vector<8x128xf32>
    %36 = arith.mulf %35, %17 : vector<8x128xf32>
    %cst_16 = arith.constant 5.000000e-01 : f32
    %37 = vector.broadcast %cst_16 : f32 to vector<8x128xf32>
    %38 = arith.addf %36, %37 : vector<8x128xf32>
    %39 = arith.subf %31, %38 : vector<8x128xf32>
    %cst_17 = arith.constant 0.00999999977 : f32
    %40 = vector.broadcast %cst_17 : f32 to vector<8x128xf32>
    %41 = arith.mulf %40, %24 : vector<8x128xf32>
    %cst_18 = arith.constant 5.000000e-01 : f32
    %42 = vector.broadcast %cst_18 : f32 to vector<8x128xf32>
    %43 = arith.addf %41, %42 : vector<8x128xf32>
    %44 = arith.subf %34, %43 : vector<8x128xf32>
    %cst_19 = arith.constant 0.000000e+00 : f32
    %45 = vector.broadcast %cst_19 : f32 to vector<8x128xf32>
    %46 = arith.cmpf oge, %39, %45 : vector<8x128xf32>
    %cst_20 = arith.constant 0.000000e+00 : f32
    %47 = vector.broadcast %cst_20 : f32 to vector<8x128xf32>
    %48 = arith.cmpf oge, %44, %47 : vector<8x128xf32>
    %49 = tpu.iota {dimensions = array<i32: 0>} : vector<8x128xi32>
    %50 = tpu.iota {dimensions = array<i32: 1>} : vector<8x128xi32>
    %c1_i32 = arith.constant 1 : i32
    %51 = arith.muli %arg0, %c1_i32 : i32
    %52 = arith.addi %51, %arg1 : i32
    %c8_i32 = arith.constant 8 : i32
    %53 = arith.muli %52, %c8_i32 : i32
    %54 = vector.broadcast %53 : i32 to vector<8x128xi32>
    %55 = arith.addi %54, %49 : vector<8x128xi32>
    %c128_i32 = arith.constant 128 : i32
    %56 = vector.broadcast %c128_i32 : i32 to vector<8x128xi32>
    %57 = arith.muli %55, %56 : vector<8x128xi32>
    %58 = arith.addi %57, %50 : vector<8x128xi32>
    %c512_i32 = arith.constant 512 : i32
    %59 = vector.broadcast %c512_i32 : i32 to vector<8x128xi32>
    %60 = arith.cmpi slt, %58, %59 : vector<8x128xi32>
    %61 = arith.andi %46, %60 : vector<8x128xi1>
    %62 = arith.andi %48, %60 : vector<8x128xi1>
    %cst_21 = arith.constant 0.000000e+00 : f32
    %63 = vector.broadcast %cst_21 : f32 to vector<8x128xf32>
    %64 = arith.select %61, %39, %63 : vector<8x128xi1>, vector<8x128xf32>
    %cst_22 = arith.constant 0.000000e+00 : f32
    %65 = vector.broadcast %cst_22 : f32 to vector<8x128xf32>
    %66 = arith.select %62, %44, %65 : vector<8x128xi1>, vector<8x128xf32>
    %c0_23 = arith.constant 0 : index
    %c0_24 = arith.constant 0 : index
    %67 = vector.load %arg11[%c0_23, %c0_24] : memref<4x128xf32, #tpu.memory_space<vmem>>, vector<1x128xf32>
    %cst_25 = arith.constant dense<0.000000e+00> : vector<128xf32>
    %68 = vector.multi_reduction <add>, %64, %cst_25 [0] : vector<8x128xf32> to vector<128xf32>
    %69 = vector.shape_cast %68 : vector<128xf32> to vector<1x128xf32>
    %70 = arith.addf %67, %69 : vector<1x128xf32>
    %c0_26 = arith.constant 0 : index
    %c0_27 = arith.constant 0 : index
    %71 = vector.load %arg11[%c0_26, %c0_27] : memref<4x128xf32, #tpu.memory_space<vmem>>, vector<1x128xf32>
    tpu.vector_store %arg11[%c0_26, %c0_27], %70 {strides = array<i32>} : memref<4x128xf32, #tpu.memory_space<vmem>>, vector<1x128xf32>,
    %c1 = arith.constant 1 : index
    %c0_28 = arith.constant 0 : index
    %72 = vector.load %arg11[%c1, %c0_28] : memref<4x128xf32, #tpu.memory_space<vmem>>, vector<1x128xf32>
    %73 = arith.extui %61 : vector<8x128xi1> to vector<8x128xi32>
    %74 = arith.sitofp %73 : vector<8x128xi32> to vector<8x128xf32>
    %cst_29 = arith.constant dense<0.000000e+00> : vector<128xf32>
    %75 = vector.multi_reduction <add>, %74, %cst_29 [0] : vector<8x128xf32> to vector<128xf32>
    %76 = vector.shape_cast %75 : vector<128xf32> to vector<1x128xf32>
    %77 = arith.addf %72, %76 : vector<1x128xf32>
    %c1_30 = arith.constant 1 : index
    %c0_31 = arith.constant 0 : index
    %78 = vector.load %arg11[%c1_30, %c0_31] : memref<4x128xf32, #tpu.memory_space<vmem>>, vector<1x128xf32>
    tpu.vector_store %arg11[%c1_30, %c0_31], %77 {strides = array<i32>} : memref<4x128xf32, #tpu.memory_space<vmem>>, vector<1x128xf32>,
    %c2 = arith.constant 2 : index
    %c0_32 = arith.constant 0 : index
    %79 = vector.load %arg11[%c2, %c0_32] : memref<4x128xf32, #tpu.memory_space<vmem>>, vector<1x128xf32>
    %cst_33 = arith.constant dense<0.000000e+00> : vector<128xf32>
    %80 = vector.multi_reduction <add>, %66, %cst_33 [0] : vector<8x128xf32> to vector<128xf32>
    %81 = vector.shape_cast %80 : vector<128xf32> to vector<1x128xf32>
    %82 = arith.addf %79, %81 : vector<1x128xf32>
    %c2_34 = arith.constant 2 : index
    %c0_35 = arith.constant 0 : index
    %83 = vector.load %arg11[%c2_34, %c0_35] : memref<4x128xf32, #tpu.memory_space<vmem>>, vector<1x128xf32>
    tpu.vector_store %arg11[%c2_34, %c0_35], %82 {strides = array<i32>} : memref<4x128xf32, #tpu.memory_space<vmem>>, vector<1x128xf32>,
    %c3 = arith.constant 3 : index
    %c0_36 = arith.constant 0 : index
    %84 = vector.load %arg11[%c3, %c0_36] : memref<4x128xf32, #tpu.memory_space<vmem>>, vector<1x128xf32>
    %85 = arith.extui %62 : vector<8x128xi1> to vector<8x128xi32>
    %86 = arith.sitofp %85 : vector<8x128xi32> to vector<8x128xf32>
    %cst_37 = arith.constant dense<0.000000e+00> : vector<128xf32>
    %87 = vector.multi_reduction <add>, %86, %cst_37 [0] : vector<8x128xf32> to vector<128xf32>
    %88 = vector.shape_cast %87 : vector<128xf32> to vector<1x128xf32>
    %89 = arith.addf %84, %88 : vector<1x128xf32>
    %c3_38 = arith.constant 3 : index
    %c0_39 = arith.constant 0 : index
    %90 = vector.load %arg11[%c3_38, %c0_39] : memref<4x128xf32, #tpu.memory_space<vmem>>, vector<1x128xf32>
    tpu.vector_store %arg11[%c3_38, %c0_39], %89 {strides = array<i32>} : memref<4x128xf32, #tpu.memory_space<vmem>>, vector<1x128xf32>,
    %c0_i32_40 = arith.constant 0 : i32
    %91 = arith.cmpi eq, %arg1, %c0_i32_40 : i32
    %92 = arith.extui %91 : i1 to i32
    %c0_i32_41 = arith.constant 0 : i32
    %93 = arith.cmpi ne, %92, %c0_i32_41 : i32
    scf.if %93 {
      %c0_42 = arith.constant 0 : index
      %c0_43 = arith.constant 0 : index
      %94 = vector.load %arg11[%c0_42, %c0_43] : memref<4x128xf32, #tpu.memory_space<vmem>>, vector<4x128xf32>
      %c0_44 = arith.constant 0 : index
      %c0_45 = arith.constant 0 : index
      %c0_46 = arith.constant 0 : index
      %95 = vector.load %arg10[%c0_44, %c0_45, %c0_46] : memref<1x4x128xf32, #tpu.memory_space<vmem>>, vector<1x4x128xf32>
      %96 = vector.shape_cast %95 : vector<1x4x128xf32> to vector<4x128xf32>
      %97 = vector.shape_cast %94 : vector<4x128xf32> to vector<1x4x128xf32>
      tpu.vector_store %arg10[%c0_44, %c0_45, %c0_46], %97 {strides = array<i32>} : memref<1x4x128xf32, #tpu.memory_space<vmem>>, vector<1x4x128xf32>,
    } else {
    }
    return
  }
  func.func @transform_0(%arg0: i32, %arg1: i32) -> (i32, i32) {
    %c1_i32 = arith.constant 1 : i32
    %0 = arith.muli %arg0, %c1_i32 : i32
    %1 = arith.addi %0, %arg1 : i32
    %c0_i32 = arith.constant 0 : i32
    %c0_i32_0 = arith.constant 0 : i32
    return %1, %c0_i32 : i32, i32
  }
  func.func @transform_1(%arg0: i32, %arg1: i32) -> (i32, i32) {
    %c1_i32 = arith.constant 1 : i32
    %0 = arith.muli %arg0, %c1_i32 : i32
    %1 = arith.addi %0, %arg1 : i32
    %c0_i32 = arith.constant 0 : i32
    %c0_i32_0 = arith.constant 0 : i32
    return %1, %c0_i32 : i32, i32
  }
  func.func @transform_2(%arg0: i32, %arg1: i32) -> (i32, i32) {
    %c1_i32 = arith.constant 1 : i32
    %0 = arith.muli %arg0, %c1_i32 : i32
    %1 = arith.addi %0, %arg1 : i32
    %c0_i32 = arith.constant 0 : i32
    %c0_i32_0 = arith.constant 0 : i32
    return %1, %c0_i32 : i32, i32
  }
  func.func @transform_3(%arg0: i32, %arg1: i32) -> (i32, i32) {
    %c1_i32 = arith.constant 1 : i32
    %0 = arith.muli %arg0, %c1_i32 : i32
    %1 = arith.addi %0, %arg1 : i32
    %c0_i32 = arith.constant 0 : i32
    %c0_i32_0 = arith.constant 0 : i32
    return %1, %c0_i32 : i32, i32
  }
  func.func @transform_4(%arg0: i32, %arg1: i32) -> (i32, i32) {
    %c1_i32 = arith.constant 1 : i32
    %0 = arith.muli %arg0, %c1_i32 : i32
    %1 = arith.addi %0, %arg1 : i32
    %c0_i32 = arith.constant 0 : i32
    %c0_i32_0 = arith.constant 0 : i32
    return %1, %c0_i32 : i32, i32
  }
  func.func @transform_5(%arg0: i32, %arg1: i32) -> (i32, i32) {
    %c1_i32 = arith.constant 1 : i32
    %0 = arith.muli %arg0, %c1_i32 : i32
    %1 = arith.addi %0, %arg1 : i32
    %c0_i32 = arith.constant 0 : i32
    %c0_i32_0 = arith.constant 0 : i32
    return %1, %c0_i32 : i32, i32
  }
  func.func @transform_6(%arg0: i32, %arg1: i32) -> (i32, i32) {
    %c1_i32 = arith.constant 1 : i32
    %0 = arith.muli %arg0, %c1_i32 : i32
    %1 = arith.addi %0, %arg1 : i32
    %c0_i32 = arith.constant 0 : i32
    %c0_i32_0 = arith.constant 0 : i32
    return %1, %c0_i32 : i32, i32
  }
  func.func @transform_7(%arg0: i32, %arg1: i32) -> (i32, i32) {
    %c1_i32 = arith.constant 1 : i32
    %0 = arith.muli %arg0, %c1_i32 : i32
    %1 = arith.addi %0, %arg1 : i32
    %c0_i32 = arith.constant 0 : i32
    %c0_i32_0 = arith.constant 0 : i32
    return %1, %c0_i32 : i32, i32
  }
  func.func @transform_8(%arg0: i32, %arg1: i32) -> (i32, i32, i32) {
    %c0_i32 = arith.constant 0 : i32
    %c0_i32_0 = arith.constant 0 : i32
    %c0_i32_1 = arith.constant 0 : i32
    return %arg0, %c0_i32, %c0_i32_0 : i32, i32, i32
  }
}

</mosaic_0001>

<llo_original>
// kernel: tpu_custom_call.1
$region0: #{tpu_custom_call.1}
  #allocation0 [shape = 'u32[]', space=smem, size = 0x4, offset = 0x4, fixed_abs, tag = 'smem constant byte address 0x4 - core index']
  #allocation1 [shape = 'u32[144,128]{1,0:T(1,128)}', space=vmem, size = 0x12000, scoped, tag = 'internal scratch']
  #allocation2 [shape = 'f32[4,128]{1,0:T(4,128)}', space=vmem, size = 0x800, scoped, tag = 'scratch operand']
  %s0 = inlined_call_operand.hbm [shape: f32[16,128], index: 0, kind: input, shape index: {}]
  %s1 = inlined_call_operand.hbm [shape: f32[16,128], index: 1, kind: input, shape index: {}]
  %s2 = inlined_call_operand.hbm [shape: f32[16,128], index: 2, kind: input, shape index: {}]
  %s3 = inlined_call_operand.hbm [shape: f32[16,128], index: 3, kind: input, shape index: {}]
  %s4 = inlined_call_operand.hbm [shape: f32[16,128], index: 4, kind: input, shape index: {}]
  %s5 = inlined_call_operand.vmem [shape: f32[16,128], index: 5, kind: input, shape index: {}]
  %s6 = inlined_call_operand.hbm [shape: f32[16,128], index: 6, kind: input, shape index: {}]
  %s7 = inlined_call_operand.hbm [shape: f32[16,128], index: 7, kind: input, shape index: {}]
  %s8 = inlined_call_operand.hbm [shape: f32[2,4,128], index: 8, kind: output, shape index: {}]
  %s9 = sld [smem:[#allocation0]]
  $region101: #{tpu_custom_call.1} parent=0
    _
  %s11 = ssub.s32 1, %s9
  %s12 = scalar_select 0, %s11, %s9
  $region1: #{tpu_custom_call.1} parent=0
    #allocation3 [shape = 'u8[8192]{0}', space=vmem, size = 0x2000, scoped, tag = 'input window, operand 0']
    #allocation4 [shape = 's32[2]{0}', space=sflag, size = 0x8, scoped, tag = 'scoped memory for tpu_custom_call.1']
    #allocation5 [shape = 's32[2]{0}', space=sflag, size = 0x8, scoped, tag = 'scoped memory for tpu_custom_call.1']
    #allocation6 [shape = 'u8[8192]{0}', space=vmem, size = 0x2000, scoped, tag = 'input window, operand 1']
    #allocation7 [shape = 's32[2]{0}', space=sflag, size = 0x8, scoped, tag = 'scoped memory for tpu_custom_call.1']
    #allocation8 [shape = 'u8[8192]{0}', space=vmem, size = 0x2000, scoped, tag = 'input window, operand 2']
    #allocation9 [shape = 'u8[8192]{0}', space=vmem, size = 0x2000, scoped, tag = 'input window, operand 3']
    #allocation10 [shape = 's32[2]{0}', space=sflag, size = 0x8, scoped, tag = 'scoped memory for tpu_custom_call.1']
    #allocation11 [shape = 'u8[8192]{0}', space=vmem, size = 0x2000, scoped, tag = 'input window, operand 4']
    #allocation12 [shape = 'u8[8192]{0}', space=vmem, size = 0x2000, scoped, tag = 'input window, operand 6']
    #allocation13 [shape = 's32[2]{0}', space=sflag, size = 0x8, scoped, tag = 'scoped memory for tpu_custom_call.1']
    #allocation14 [shape = 'u8[8192]{0}', space=vmem, size = 0x2000, scoped, tag = 'input window, operand 7']
    #allocation15 [shape = 'u8[4096]{0}', space=vmem, size = 0x1000, scoped, tag = 'output window, operand 0']
    %13 = vsyncpa [#allocation4], 0
    %s14 = scalar_lea.sflag [#allocation4], 1
    %15 = vsyncpa %s14, 0
    %16 = vsyncpa [#allocation7], 0
    %s17 = scalar_lea.sflag [#allocation7], 1
    %18 = vsyncpa %s17, 0
    %19 = vsyncpa [#allocation10], 0
    %s20 = scalar_lea.sflag [#allocation10], 1
    %21 = vsyncpa %s20, 0
    %22 = vsyncpa [#allocation13], 0
    %s23 = scalar_lea.sflag [#allocation13], 1
    %24 = vsyncpa %s23, 0
    %25 = vsyncpa [#allocation5], 0
    %s26 = scalar_lea.sflag [#allocation5], 1
    %27 = vsyncpa %s26, 0
    loop: start=0, step=1, limit=4
    $region2: #{tpu_custom_call.1} parent=1 // loop_pre_header
      _
    $region3: #{tpu_custom_call.1} parent=1 // loop_header
      %s29 = sphi 0, %s33
      %p30 = scmp.ge.s32.totalorder %s29, 4
      %s36 = sphi 0, %s48
      %s37 = sphi 0, %s44
      %s38 = sphi 0, %s36
      %s39 = sphi 0, %s37
      %s40 = sphi 0, %s38
      %s41 = sphi 0, %s39
      %s53 = sphi 0, %s55
      %s56 = sphi 0, %s53
      %s57 = sphi 0, %s56
      %s73 = sphi 0, %s57
      %s81 = sphi 0, %s83
      %s84 = sphi 0, %s81
      %s85 = sphi 0, %s84
      %s101 = sphi 0, %s85
      %s109 = sphi 0, %s111
      %s112 = sphi 0, %s109
      %s113 = sphi 0, %s112
      %s129 = sphi 0, %s113
      %s137 = sphi 0, %s139
      %s140 = sphi 0, %s137
      %s141 = sphi 0, %s140
      %s157 = sphi 0, %s141
      %s165 = sphi 0, %s167
      %s168 = sphi 0, %s165
      %s169 = sphi 0, %s168
      %s185 = sphi 0, %s169
      %s193 = sphi 0, %s195
      %s196 = sphi 0, %s193
      %s197 = sphi 0, %s196
      %s213 = sphi 0, %s197
      %s221 = sphi 0, %s223
      %s224 = sphi 0, %s221
      %s225 = sphi 0, %s224
      %s241 = sphi 0, %s225
      %s249 = sphi 0, %s251
      %s252 = sphi 0, %s249
      %s253 = sphi 0, %s252
      %s269 = sphi 0, %s253
      %s275 = sphi 0, %s277
      %s278 = sphi 0, %s275
      %s279 = sphi 0, %s278
      %s295 = sphi 0, %s279
    $region4: #{tpu_custom_call.1} parent=1 // loop_header_branch
      %32 = sbr.rel (%p30) target = $region8
    $region5: #{tpu_custom_call.1} parent=1 // loop_body
      %s34 = ssub.s32 %s29, 1
      %s35 = ssub.s32 %s29, 2
      %s42 = sadd.s32 1, %s37
      %p43 = scmp.ge.s32.totalorder %s42, 1
      %s44 = scalar_select %p43, 0, %s42
      %s45 = sadd.s32 1, %s36
      %s46 = scalar_select %p43, %s45, %s36
      %p47 = scmp.ge.s32.totalorder %s46, 2
      %s48 = scalar_select %p47, 0, %s46
      %s49 = sadd.s32 %s36, %s37
      %s50 = sadd.s32 %s48, %s44
      %s51 = ssub.s32 %s49, %s50
      %p52 = scmp.eq.s32.totalorder %s51, 0
      %s54 = sadd.s32 %s53, 1
      %s55 = scalar_select %p52, %s53, %s54
      %p58 = pneg %p52
      %p59 = scmp.eq.s32.totalorder %s29, 1
      %p60 = por %p58, %p59
      %p61 = scmp.ne.s32.totalorder %s53, %s56
      %p62 = scmp.eq.s32.totalorder %s29, 0
      %p63 = por %p61, %p62
      %p64 = scmp.ne.s32.totalorder %s53, %s56
      %p65 = scmp.eq.s32.totalorder %s34, 1
      %p66 = por %p64, %p65
      %p67 = scmp.ne.s32.totalorder %s56, %s57
      %p68 = scmp.eq.s32.totalorder %s34, 0
      %p69 = por %p67, %p68
      %p70 = scmp.ne.s32.totalorder %s56, %s57
      %p71 = scmp.eq.s32.totalorder %s35, 1
      %p72 = por %p70, %p71
      %p74 = scmp.ne.s32.totalorder %s57, %s73
      %p75 = scmp.eq.s32.totalorder %s35, 0
      %p76 = por %p74, %p75
      %s77 = sadd.s32 %s36, %s37
      %s78 = sadd.s32 %s48, %s44
      %s79 = ssub.s32 %s77, %s78
      %p80 = scmp.eq.s32.totalorder %s79, 0
      %s82 = sadd.s32 %s81, 1
      %s83 = scalar_select %p80, %s81, %s82
      %p86 = pneg %p80
      %p87 = scmp.eq.s32.totalorder %s29, 1
      %p88 = por %p86, %p87
      %p89 = scmp.ne.s32.totalorder %s81, %s84
      %p90 = scmp.eq.s32.totalorder %s29, 0
      %p91 = por %p89, %p90
      %p92 = scmp.ne.s32.totalorder %s81, %s84
      %p93 = scmp.eq.s32.totalorder %s34, 1
      %p94 = por %p92, %p93
      %p95 = scmp.ne.s32.totalorder %s84, %s85
      %p96 = scmp.eq.s32.totalorder %s34, 0
      %p97 = por %p95, %p96
      %p98 = scmp.ne.s32.totalorder %s84, %s85
      %p99 = scmp.eq.s32.totalorder %s35, 1
      %p100 = por %p98, %p99
      %p102 = scmp.ne.s32.totalorder %s85, %s101
      %p103 = scmp.eq.s32.totalorder %s35, 0
      %p104 = por %p102, %p103
      %s105 = sadd.s32 %s36, %s37
      %s106 = sadd.s32 %s48, %s44
      %s107 = ssub.s32 %s105, %s106
      %p108 = scmp.eq.s32.totalorder %s107, 0
      %s110 = sadd.s32 %s109, 1
      %s111 = scalar_select %p108, %s109, %s110
      %p114 = pneg %p108
      %p115 = scmp.eq.s32.totalorder %s29, 1
      %p116 = por %p114, %p115
      %p117 = scmp.ne.s32.totalorder %s109, %s112
      %p118 = scmp.eq.s32.totalorder %s29, 0
      %p119 = por %p117, %p118
      %p120 = scmp.ne.s32.totalorder %s109, %s112
      %p121 = scmp.eq.s32.totalorder %s34, 1
      %p122 = por %p120, %p121
      %p123 = scmp.ne.s32.totalorder %s112, %s113
      %p124 = scmp.eq.s32.totalorder %s34, 0
      %p125 = por %p123, %p124
      %p126 = scmp.ne.s32.totalorder %s112, %s113
      %p127 = scmp.eq.s32.totalorder %s35, 1
      %p128 = por %p126, %p127
      %p130 = scmp.ne.s32.totalorder %s113, %s129
      %p131 = scmp.eq.s32.totalorder %s35, 0
      %p132 = por %p130, %p131
      %s133 = sadd.s32 %s36, %s37
      %s134 = sadd.s32 %s48, %s44
      %s135 = ssub.s32 %s133, %s134
      %p136 = scmp.eq.s32.totalorder %s135, 0
      %s138 = sadd.s32 %s137, 1
      %s139 = scalar_select %p136, %s137, %s138
      %p142 = pneg %p136
      %p143 = scmp.eq.s32.totalorder %s29, 1
      %p144 = por %p142, %p143
      %p145 = scmp.ne.s32.totalorder %s137, %s140
      %p146 = scmp.eq.s32.totalorder %s29, 0
      %p147 = por %p145, %p146
      %p148 = scmp.ne.s32.totalorder %s137, %s140
      %p149 = scmp.eq.s32.totalorder %s34, 1
      %p150 = por %p148, %p149
      %p151 = scmp.ne.s32.totalorder %s140, %s141
      %p152 = scmp.eq.s32.totalorder %s34, 0
      %p153 = por %p151, %p152
      %p154 = scmp.ne.s32.totalorder %s140, %s141
      %p155 = scmp.eq.s32.totalorder %s35, 1
      %p156 = por %p154, %p155
      %p158 = scmp.ne.s32.totalorder %s141, %s157
      %p159 = scmp.eq.s32.totalorder %s35, 0
      %p160 = por %p158, %p159
      %s161 = sadd.s32 %s36, %s37
      %s162 = sadd.s32 %s48, %s44
      %s163 = ssub.s32 %s161, %s162
      %p164 = scmp.eq.s32.totalorder %s163, 0
      %s166 = sadd.s32 %s165, 1
      %s167 = scalar_select %p164, %s165, %s166
      %p170 = pneg %p164
      %p171 = scmp.eq.s32.totalorder %s29, 1
      %p172 = por %p170, %p171
      %p173 = scmp.ne.s32.totalorder %s165, %s168
      %p174 = scmp.eq.s32.totalorder %s29, 0
      %p175 = por %p173, %p174
      %p176 = scmp.ne.s32.totalorder %s165, %s168
      %p177 = scmp.eq.s32.totalorder %s34, 1
      %p178 = por %p176, %p177
      %p179 = scmp.ne.s32.totalorder %s168, %s169
      %p180 = scmp.eq.s32.totalorder %s34, 0
      %p181 = por %p179, %p180
      %p182 = scmp.ne.s32.totalorder %s168, %s169
      %p183 = scmp.eq.s32.totalorder %s35, 1
      %p184 = por %p182, %p183
      %p186 = scmp.ne.s32.totalorder %s169, %s185
      %p187 = scmp.eq.s32.totalorder %s35, 0
      %p188 = por %p186, %p187
      %s189 = sadd.s32 %s36, %s37
      %s190 = sadd.s32 %s48, %s44
      %s191 = ssub.s32 %s189, %s190
      %p192 = scmp.eq.s32.totalorder %s191, 0
      %s194 = sadd.s32 %s193, 1
      %s195 = scalar_select %p192, %s193, %s194
      %p198 = pneg %p192
      %p199 = scmp.eq.s32.totalorder %s29, 1
      %p200 = por %p198, %p199
      %p201 = scmp.ne.s32.totalorder %s193, %s196
      %p202 = scmp.eq.s32.totalorder %s29, 0
      %p203 = por %p201, %p202
      %p204 = scmp.ne.s32.totalorder %s193, %s196
      %p205 = scmp.eq.s32.totalorder %s34, 1
      %p206 = por %p204, %p205
      %p207 = scmp.ne.s32.totalorder %s196, %s197
      %p208 = scmp.eq.s32.totalorder %s34, 0
      %p209 = por %p207, %p208
      %p210 = scmp.ne.s32.totalorder %s196, %s197
      %p211 = scmp.eq.s32.totalorder %s35, 1
      %p212 = por %p210, %p211
      %p214 = scmp.ne.s32.totalorder %s197, %s213
      %p215 = scmp.eq.s32.totalorder %s35, 0
      %p216 = por %p214, %p215
      %s217 = sadd.s32 %s36, %s37
      %s218 = sadd.s32 %s48, %s44
      %s219 = ssub.s32 %s217, %s218
      %p220 = scmp.eq.s32.totalorder %s219, 0
      %s222 = sadd.s32 %s221, 1
      %s223 = scalar_select %p220, %s221, %s222
      %p226 = pneg %p220
      %p227 = scmp.eq.s32.totalorder %s29, 1
      %p228 = por %p226, %p227
      %p229 = scmp.ne.s32.totalorder %s221, %s224
      %p230 = scmp.eq.s32.totalorder %s29, 0
      %p231 = por %p229, %p230
      %p232 = scmp.ne.s32.totalorder %s221, %s224
      %p233 = scmp.eq.s32.totalorder %s34, 1
      %p234 = por %p232, %p233
      %p235 = scmp.ne.s32.totalorder %s224, %s225
      %p236 = scmp.eq.s32.totalorder %s34, 0
      %p237 = por %p235, %p236
      %p238 = scmp.ne.s32.totalorder %s224, %s225
      %p239 = scmp.eq.s32.totalorder %s35, 1
      %p240 = por %p238, %p239
      %p242 = scmp.ne.s32.totalorder %s225, %s241
      %p243 = scmp.eq.s32.totalorder %s35, 0
      %p244 = por %p242, %p243
      %s245 = sadd.s32 %s36, %s37
      %s246 = sadd.s32 %s48, %s44
      %s247 = ssub.s32 %s245, %s246
      %p248 = scmp.eq.s32.totalorder %s247, 0
      %s250 = sadd.s32 %s249, 1
      %s251 = scalar_select %p248, %s249, %s250
      %p254 = pneg %p248
      %p255 = scmp.eq.s32.totalorder %s29, 1
      %p256 = por %p254, %p255
      %p257 = scmp.ne.s32.totalorder %s249, %s252
      %p258 = scmp.eq.s32.totalorder %s29, 0
      %p259 = por %p257, %p258
      %p260 = scmp.ne.s32.totalorder %s249, %s252
      %p261 = scmp.eq.s32.totalorder %s34, 1
      %p262 = por %p260, %p261
      %p263 = scmp.ne.s32.totalorder %s252, %s253
      %p264 = scmp.eq.s32.totalorder %s34, 0
      %p265 = por %p263, %p264
      %p266 = scmp.ne.s32.totalorder %s252, %s253
      %p267 = scmp.eq.s32.totalorder %s35, 1
      %p268 = por %p266, %p267
      %p270 = scmp.ne.s32.totalorder %s253, %s269
      %p271 = scmp.eq.s32.totalorder %s35, 0
      %p272 = por %p270, %p271
      %s273 = ssub.s32 %s36, %s48
      %p274 = scmp.eq.s32.totalorder %s273, 0
      %s276 = sadd.s32 %s275, 1
      %s277 = scalar_select %p274, %s275, %s276
      %p280 = pneg %p274
      %p281 = scmp.eq.s32.totalorder %s29, 1
      %p282 = por %p280, %p281
      %p283 = scmp.ne.s32.totalorder %s275, %s278
      %p284 = scmp.eq.s32.totalorder %s29, 0
      %p285 = por %p283, %p284
      %p286 = scmp.ne.s32.totalorder %s275, %s278
      %p287 = scmp.eq.s32.totalorder %s34, 1
      %p288 = por %p286, %p287
      %p289 = scmp.ne.s32.totalorder %s278, %s279
      %p290 = scmp.eq.s32.totalorder %s34, 0
      %p291 = por %p289, %p290
      %p292 = scmp.ne.s32.totalorder %s278, %s279
      %p293 = scmp.eq.s32.totalorder %s35, 1
      %p294 = por %p292, %p293
      %p296 = scmp.ne.s32.totalorder %s279, %s295
      %p297 = scmp.eq.s32.totalorder %s35, 0
      %p298 = por %p296, %p297
      %p299 = scmp.le.s32.totalorder 1, %s29
      %p300 = scmp.lt.s32.totalorder %s29, 3
      %p301 = pnand %p299, %p300
      %p302 = pneg %p301
      // Predicated region
      $region9: #{tpu_custom_call.1} parent=5 // pred_check
        _
      $region10: #{tpu_custom_call.1} parent=5 // pred_check_branch
        %304 = sbr.rel (%p301) target = $region12
      $region11: #{tpu_custom_call.1} parent=5 // pred_region
        %s305 = ssub.s32 %s29, 1
      $region12: #{tpu_custom_call.1} parent=5 // pred_fallthru
        _
      %p306 = scmp.lt.s32.totalorder %s29, 2
      // Predicated region
      $region13: #{tpu_custom_call.1} parent=5 // pred_check
        %p307 = pneg %p306
      $region14: #{tpu_custom_call.1} parent=5 // pred_check_branch
        %309 = sbr.rel (%p307) target = $region16
      $region15: #{tpu_custom_call.1} parent=5 // pred_region
        // Predicated region
        $region17: #{tpu_custom_call.1} parent=15 // pred_check
          %p310 = pneg %p63
        $region18: #{tpu_custom_call.1} parent=15 // pred_check_branch
          %312 = sbr.rel (%p310) target = $region20
        $region19: #{tpu_custom_call.1} parent=15 // pred_region
          %s313 = sand.u32 %s53, 1
          %s314 = scalar_lea.sflag [#allocation4], %s313
          %s315 = sand.u32 %s53, 1
          %s316 = smul.addr %s315, 8
          %s317 = scalar_lea.vmem [#allocation3], %s316
          %s318 = sadd.s32 %s36, %s37
          %s320 = ssub.s32 128, 128
          %321 = vsyncadd %s314, %s320
          %s322 = smul.addr %s318, 128
          %s323 = scalar_lea.hbm %s0, %s322
          %s325 = sshll.u32 %s317, 4
          %s326 = int_to_ptr.vmem [resolvable:$true] %s325
          %328 = dma.hbm_to_vmem [thread:$0]  %s323, 128, %s326, %s314
        $region20: #{tpu_custom_call.1} parent=15 // pred_fallthru
          _
        // Predicated region
        $region21: #{tpu_custom_call.1} parent=15 // pred_check
          %p329 = pneg %p91
        $region22: #{tpu_custom_call.1} parent=15 // pred_check_branch
          %331 = sbr.rel (%p329) target = $region24
        $region23: #{tpu_custom_call.1} parent=15 // pred_region
          %s332 = sand.u32 %s29, 1
          %s333 = scalar_lea.sflag [#allocation7], %s332
          %s334 = sand.u32 %s81, 1
          %s335 = smul.addr %s334, 8
          %s336 = scalar_lea.vmem [#allocation6], %s335
          %s337 = sadd.s32 %s36, %s37
          %s339 = ssub.s32 128, 128
          %340 = vsyncadd %s333, %s339
          %s341 = smul.addr %s337, 128
          %s342 = scalar_lea.hbm %s1, %s341
          %s344 = sshll.u32 %s336, 4
          %s345 = int_to_ptr.vmem [resolvable:$true] %s344
          %347 = dma.hbm_to_vmem [thread:$0]  %s342, 128, %s345, %s333
        $region24: #{tpu_custom_call.1} parent=15 // pred_fallthru
          _
        // Predicated region
        $region25: #{tpu_custom_call.1} parent=15 // pred_check
          %p348 = pneg %p119
        $region26: #{tpu_custom_call.1} parent=15 // pred_check_branch
          %350 = sbr.rel (%p348) target = $region28
        $region27: #{tpu_custom_call.1} parent=15 // pred_region
          %s351 = sand.u32 %s29, 1
          %s352 = scalar_lea.sflag [#allocation7], %s351
          %s353 = sand.u32 %s109, 1
          %s354 = smul.addr %s353, 8
          %s355 = scalar_lea.vmem [#allocation8], %s354
          %s356 = sadd.s32 %s36, %s37
          %s358 = ssub.s32 128, 128
          %359 = vsyncadd %s352, %s358
          %s360 = smul.addr %s356, 128
          %s361 = scalar_lea.hbm %s2, %s360
          %s363 = sshll.u32 %s355, 4
          %s364 = int_to_ptr.vmem [resolvable:$true] %s363
          %366 = dma.hbm_to_vmem [thread:$0]  %s361, 128, %s364, %s352
        $region28: #{tpu_custom_call.1} parent=15 // pred_fallthru
          _
        // Predicated region
        $region29: #{tpu_custom_call.1} parent=15 // pred_check
          %p367 = pneg %p147
        $region30: #{tpu_custom_call.1} parent=15 // pred_check_branch
          %369 = sbr.rel (%p367) target = $region32
        $region31: #{tpu_custom_call.1} parent=15 // pred_region
          %s370 = sand.u32 %s29, 1
          %s371 = scalar_lea.sflag [#allocation10], %s370
          %s372 = sand.u32 %s137, 1
          %s373 = smul.addr %s372, 8
          %s374 = scalar_lea.vmem [#allocation9], %s373
          %s375 = sadd.s32 %s36, %s37
          %s377 = ssub.s32 128, 128
          %378 = vsyncadd %s371, %s377
          %s379 = smul.addr %s375, 128
          %s380 = scalar_lea.hbm %s3, %s379
          %s382 = sshll.u32 %s374, 4
          %s383 = int_to_ptr.vmem [resolvable:$true] %s382
          %385 = dma.hbm_to_vmem [thread:$0]  %s380, 128, %s383, %s371
        $region32: #{tpu_custom_call.1} parent=15 // pred_fallthru
          _
        // Predicated region
        $region33: #{tpu_custom_call.1} parent=15 // pred_check
          %p386 = pneg %p175
        $region34: #{tpu_custom_call.1} parent=15 // pred_check_branch
          %388 = sbr.rel (%p386) target = $region36
        $region35: #{tpu_custom_call.1} parent=15 // pred_region
          %s389 = sand.u32 %s29, 1
          %s390 = scalar_lea.sflag [#allocation10], %s389
          %s391 = sand.u32 %s165, 1
          %s392 = smul.addr %s391, 8
          %s393 = scalar_lea.vmem [#allocation11], %s392
          %s394 = sadd.s32 %s36, %s37
          %s396 = ssub.s32 128, 128
          %397 = vsyncadd %s390, %s396
          %s398 = smul.addr %s394, 128
          %s399 = scalar_lea.hbm %s4, %s398
          %s401 = sshll.u32 %s393, 4
          %s402 = int_to_ptr.vmem [resolvable:$true] %s401
          %404 = dma.hbm_to_vmem [thread:$0]  %s399, 128, %s402, %s390
        $region36: #{tpu_custom_call.1} parent=15 // pred_fallthru
          _
        // Predicated region
        $region37: #{tpu_custom_call.1} parent=15 // pred_check
          %p405 = pneg %p203
        $region38: #{tpu_custom_call.1} parent=15 // pred_check_branch
          %407 = sbr.rel (%p405) target = $region40
        $region39: #{tpu_custom_call.1} parent=15 // pred_region
          %s408 = sadd.s32 %s36, %s37
          %p409 = scmp.lt.s32.totalorder %s408, 1
          %s410 = scalar_select %p409, %s408, 1
          %s411 = smul.addr %s410, 8
          %s412 = scalar_lea.vmem %s5, %s411
          %s413 = sadd.s32 %s36, %s37
        $region40: #{tpu_custom_call.1} parent=15 // pred_fallthru
          _
        // Predicated region
        $region41: #{tpu_custom_call.1} parent=15 // pred_check
          %p414 = pneg %p231
        $region42: #{tpu_custom_call.1} parent=15 // pred_check_branch
          %416 = sbr.rel (%p414) target = $region44
        $region43: #{tpu_custom_call.1} parent=15 // pred_region
          %s417 = sand.u32 %s29, 1
          %s418 = scalar_lea.sflag [#allocation13], %s417
          %s419 = sand.u32 %s221, 1
          %s420 = smul.addr %s419, 8
          %s421 = scalar_lea.vmem [#allocation12], %s420
          %s422 = sadd.s32 %s36, %s37
          %s424 = ssub.s32 128, 128
          %425 = vsyncadd %s418, %s424
          %s426 = smul.addr %s422, 128
          %s427 = scalar_lea.hbm %s6, %s426
          %s429 = sshll.u32 %s421, 4
          %s430 = int_to_ptr.vmem [resolvable:$true] %s429
          %432 = dma.hbm_to_vmem [thread:$0]  %s427, 128, %s430, %s418
        $region44: #{tpu_custom_call.1} parent=15 // pred_fallthru
          _
        // Predicated region
        $region45: #{tpu_custom_call.1} parent=15 // pred_check
          %p433 = pneg %p259
        $region46: #{tpu_custom_call.1} parent=15 // pred_check_branch
          %435 = sbr.rel (%p433) target = $region48
        $region47: #{tpu_custom_call.1} parent=15 // pred_region
          %s436 = sand.u32 %s29, 1
          %s437 = scalar_lea.sflag [#allocation13], %s436
          %s438 = sand.u32 %s249, 1
          %s439 = smul.addr %s438, 8
          %s440 = scalar_lea.vmem [#allocation14], %s439
          %s441 = sadd.s32 %s36, %s37
          %s443 = ssub.s32 128, 128
          %444 = vsyncadd %s437, %s443
          %s445 = smul.addr %s441, 128
          %s446 = scalar_lea.hbm %s7, %s445
          %s448 = sshll.u32 %s440, 4
          %s449 = int_to_ptr.vmem [resolvable:$true] %s448
          %451 = dma.hbm_to_vmem [thread:$0]  %s446, 128, %s449, %s437
        $region48: #{tpu_custom_call.1} parent=15 // pred_fallthru
          _
      $region16: #{tpu_custom_call.1} parent=5 // pred_fallthru
        _
      %p452 = scmp.le.s32.totalorder 1, %s29
      %p453 = scmp.lt.s32.totalorder %s29, 3
      %p454 = pnand %p452, %p453
      %p455 = pneg %p454
      // Predicated region
      $region49: #{tpu_custom_call.1} parent=5 // pred_check
        _
      $region50: #{tpu_custom_call.1} parent=5 // pred_check_branch
        %457 = sbr.rel (%p454) target = $region52
      $region51: #{tpu_custom_call.1} parent=5 // pred_region
        %s458 = ssub.s32 %s29, 1
        %s459 = sand.u32 %s56, 1
        %s460 = scalar_lea.sflag [#allocation4], %s459
        %s461 = sand.u32 %s56, 1
        %s462 = smul.addr %s461, 8
        %s463 = scalar_lea.vmem [#allocation3], %s462
        // Predicated region
        $region53: #{tpu_custom_call.1} parent=51 // pred_check
          %p464 = pneg %p69
        $region54: #{tpu_custom_call.1} parent=51 // pred_check_branch
          %466 = sbr.rel (%p464) target = $region56
        $region55: #{tpu_custom_call.1} parent=51 // pred_region
          %467 = dma.done %s460, 128
        $region56: #{tpu_custom_call.1} parent=51 // pred_fallthru
          _
        %s468 = sand.u32 %s34, 1
        %s469 = scalar_lea.sflag [#allocation7], %s468
        %s470 = sand.u32 %s84, 1
        %s471 = smul.addr %s470, 8
        %s472 = scalar_lea.vmem [#allocation6], %s471
        // Predicated region
        $region57: #{tpu_custom_call.1} parent=51 // pred_check
          %p473 = pneg %p97
        $region58: #{tpu_custom_call.1} parent=51 // pred_check_branch
          %475 = sbr.rel (%p473) target = $region60
        $region59: #{tpu_custom_call.1} parent=51 // pred_region
          %476 = dma.done %s469, 128
        $region60: #{tpu_custom_call.1} parent=51 // pred_fallthru
          _
        %s477 = sand.u32 %s34, 1
        %s478 = scalar_lea.sflag [#allocation7], %s477
        %s479 = sand.u32 %s112, 1
        %s480 = smul.addr %s479, 8
        %s481 = scalar_lea.vmem [#allocation8], %s480
        // Predicated region
        $region61: #{tpu_custom_call.1} parent=51 // pred_check
          %p482 = pneg %p125
        $region62: #{tpu_custom_call.1} parent=51 // pred_check_branch
          %484 = sbr.rel (%p482) target = $region64
        $region63: #{tpu_custom_call.1} parent=51 // pred_region
          %485 = dma.done %s478, 128
        $region64: #{tpu_custom_call.1} parent=51 // pred_fallthru
          _
        %s486 = sand.u32 %s34, 1
        %s487 = scalar_lea.sflag [#allocation10], %s486
        %s488 = sand.u32 %s140, 1
        %s489 = smul.addr %s488, 8
        %s490 = scalar_lea.vmem [#allocation9], %s489
        // Predicated region
        $region65: #{tpu_custom_call.1} parent=51 // pred_check
          %p491 = pneg %p153
        $region66: #{tpu_custom_call.1} parent=51 // pred_check_branch
          %493 = sbr.rel (%p491) target = $region68
        $region67: #{tpu_custom_call.1} parent=51 // pred_region
          %494 = dma.done %s487, 128
        $region68: #{tpu_custom_call.1} parent=51 // pred_fallthru
          _
        %s495 = sand.u32 %s34, 1
        %s496 = scalar_lea.sflag [#allocation10], %s495
        %s497 = sand.u32 %s168, 1
        %s498 = smul.addr %s497, 8
        %s499 = scalar_lea.vmem [#allocation11], %s498
        // Predicated region
        $region69: #{tpu_custom_call.1} parent=51 // pred_check
          %p500 = pneg %p181
        $region70: #{tpu_custom_call.1} parent=51 // pred_check_branch
          %502 = sbr.rel (%p500) target = $region72
        $region71: #{tpu_custom_call.1} parent=51 // pred_region
          %503 = dma.done %s496, 128
        $region72: #{tpu_custom_call.1} parent=51 // pred_fallthru
          _
        %s504 = sand.u32 %s34, 1
        %s505 = scalar_lea.sflag [#allocation13], %s504
        %s506 = sand.u32 %s224, 1
        %s507 = smul.addr %s506, 8
        %s508 = scalar_lea.vmem [#allocation12], %s507
        // Predicated region
        $region73: #{tpu_custom_call.1} parent=51 // pred_check
          %p509 = pneg %p237
        $region74: #{tpu_custom_call.1} parent=51 // pred_check_branch
          %511 = sbr.rel (%p509) target = $region76
        $region75: #{tpu_custom_call.1} parent=51 // pred_region
          %512 = dma.done %s505, 128
        $region76: #{tpu_custom_call.1} parent=51 // pred_fallthru
          _
        %s513 = sand.u32 %s34, 1
        %s514 = scalar_lea.sflag [#allocation13], %s513
        %s515 = sand.u32 %s252, 1
        %s516 = smul.addr %s515, 8
        %s517 = scalar_lea.vmem [#allocation14], %s516
        // Predicated region
        $region77: #{tpu_custom_call.1} parent=51 // pred_check
          %p518 = pneg %p265
        $region78: #{tpu_custom_call.1} parent=51 // pred_check_branch
          %520 = sbr.rel (%p518) target = $region80
        $region79: #{tpu_custom_call.1} parent=51 // pred_region
          %521 = dma.done %s514, 128
        $region80: #{tpu_custom_call.1} parent=51 // pred_fallthru
          _
        %s522 = sand.u32 %s56, 1
        %s523 = scalar_lea.sflag [#allocation4], %s522
        %s524 = sand.u32 %s56, 1
        %s525 = smul.addr %s524, 8
        %s526 = scalar_lea.vmem [#allocation3], %s525
        %p527 = pneg %p69
        %p528 = pneg %p66
        %s529 = sand.u32 %s34, 1
        %s530 = scalar_lea.sflag [#allocation7], %s529
        %s531 = sand.u32 %s84, 1
        %s532 = smul.addr %s531, 8
        %s533 = scalar_lea.vmem [#allocation6], %s532
        %p534 = pneg %p97
        %p535 = pneg %p94
        %s536 = sand.u32 %s34, 1
        %s537 = scalar_lea.sflag [#allocation7], %s536
        %s538 = sand.u32 %s112, 1
        %s539 = smul.addr %s538, 8
        %s540 = scalar_lea.vmem [#allocation8], %s539
        %p541 = pneg %p125
        %p542 = pneg %p122
        %s543 = sand.u32 %s34, 1
        %s544 = scalar_lea.sflag [#allocation10], %s543
        %s545 = sand.u32 %s140, 1
        %s546 = smul.addr %s545, 8
        %s547 = scalar_lea.vmem [#allocation9], %s546
        %p548 = pneg %p153
        %p549 = pneg %p150
        %s550 = sand.u32 %s34, 1
        %s551 = scalar_lea.sflag [#allocation10], %s550
        %s552 = sand.u32 %s168, 1
        %s553 = smul.addr %s552, 8
        %s554 = scalar_lea.vmem [#allocation11], %s553
        %p555 = pneg %p181
        %p556 = pneg %p178
        %s557 = sadd.s32 %s38, %s39
        %p558 = scmp.lt.s32.totalorder %s557, 1
        %s559 = scalar_select %p558, %s557, 1
        %s560 = smul.addr %s559, 8
        %s561 = scalar_lea.vmem %s5, %s560
        %p562 = pneg %p209
        %p563 = pneg %p206
        %s564 = sand.u32 %s34, 1
        %s565 = scalar_lea.sflag [#allocation13], %s564
        %s566 = sand.u32 %s224, 1
        %s567 = smul.addr %s566, 8
        %s568 = scalar_lea.vmem [#allocation12], %s567
        %p569 = pneg %p237
        %p570 = pneg %p234
        %s571 = sand.u32 %s34, 1
        %s572 = scalar_lea.sflag [#allocation13], %s571
        %s573 = sand.u32 %s252, 1
        %s574 = smul.addr %s573, 8
        %s575 = scalar_lea.vmem [#allocation14], %s574
        %p576 = pneg %p265
        %p577 = pneg %p262
        %p578 = pneg %p291
        %p579 = pneg %p288
        %s580 = sand.u32 %s278, 1
        %s581 = scalar_lea.sflag [#allocation5], %s580
        %s582 = sand.u32 %s278, 1
        %s583 = smul.addr %s582, 4
        %s584 = scalar_lea.vmem [#allocation15], %s583
        %s585 = sadd.s32 %s38, %s39
        %s586 = sadd.s32 %s38, %s39
        %s587 = sadd.s32 %s38, %s39
        %s588 = sadd.s32 %s38, %s39
        %s589 = sadd.s32 %s38, %s39
        %s590 = sadd.s32 %s38, %s39
        %p591 = scmp.lt.s32.totalorder %s590, 1
        %s592 = scalar_select %p591, %s590, 1
        %s593 = smul.addr %s592, 8
        %s594 = scalar_lea.vmem %s5, %s593
        %s595 = sadd.s32 %s38, %s39
        %s596 = sadd.s32 %s38, %s39
        %s597 = sadd.s32 %s38, %s39
        %p598 = scmp.eq.s32.totalorder %s39, 0
        // Predicated region
        $region81: #{tpu_custom_call.1} parent=51 // pred_check
          %p599 = pneg %p598
        $region82: #{tpu_custom_call.1} parent=51 // pred_check_branch
          %601 = sbr.rel (%p599) target = $region84
        $region83: #{tpu_custom_call.1} parent=51 // pred_region
          %602 = vst [vmem:[#allocation2] sm:$0xf] 0.0
        $region84: #{tpu_custom_call.1} parent=51 // pred_fallthru
          _
        %v603 = vld [vmem:[%s463] sm:$0xff]
        %v604 = vld [vmem:[%s472] sm:$0xff]
        %v605 = vld [vmem:[%s481] sm:$0xff]
        %v606 = vld [vmem:[%s490] sm:$0xff]
        %v607 = vld [vmem:[%s499] sm:$0xff]
        %v608 = vld [vmem:[%s594] sm:$0xff]
        %v609 = vld [vmem:[%s508] sm:$0xff]
        %v610 = vld [vmem:[%s517] sm:$0xff]
        %v611 = vmul.f32 %v603, %v603
        %v612 = vmul.f32 %v604, %v604
        %v613 = vadd.f32 %v611, %v612
        %v614 = vmul.f32 %v609, %v609
        %v615 = vadd.f32 %v613, %v614
        %v616 = vmul.f32 %v610, %v610
        %v617 = vadd.f32 %v615, %v616
        %v618 = vmul.f32 %v605, %v605
        %v619 = vmul.f32 %v606, %v606
        %v620 = vadd.f32 %v618, %v619
        %v621 = vmul.f32 %v607, %v607
        %v622 = vadd.f32 %v620, %v621
        %v623 = vmul.f32 %v608, %v608
        %v624 = vadd.f32 %v622, %v623
        %v625 = vadd.f32 %v603, %v609
        %v626 = vadd.f32 %v604, %v610
        %v627 = vadd.f32 %v605, %v607
        %v628 = vadd.f32 %v606, %v608
        %v629 = vmul.f32 %v625, %v625
        %v630 = vmul.f32 %v626, %v626
        %v631 = vadd.f32 %v629, %v630
        %v632 = vmul.f32 %v627, %v627
        %v633 = vmul.f32 %v628, %v628
        %v634 = vadd.f32 %v632, %v633
        %v635 = vmul.f32 %v617, 0.01
        %v636 = vadd.f32 %v635, 0.5
        %v637 = vsub.f32 %v631, %v636
        %v638 = vmul.f32 %v624, 0.01
        %v639 = vadd.f32 %v638, 0.5
        %v640 = vsub.f32 %v634, %v639
        %vm641 = vcmp.ge.f32.partialorder %v637, 0.0
        %vm642 = vcmp.ge.f32.partialorder %v640, 0.0
        %v643 = vlaneseq
        %v644 = vshrl.u32 %v643, 7
        %v645 = vlaneseq
        %v646 = vand.u32 %v645, 127
        %s647 = sadd.s32 %s38, %s39
        %s648 = smul.u32 %s647, 8
        %v649 = vstv %s648
        %v650 = vadd.s32 %v649, %v644
        %v651 = vmul.u32 %v650, 128
        %v652 = vadd.s32 %v651, %v646
        %vm653 = vcmp.lt.s32.totalorder %v652, 512
        %vm654 = vmand %vm641, %vm653
        %vm655 = vmand %vm642, %vm653
        %v656 = vsel %vm654, %v637, 0.0
        %v657 = vsel %vm655, %v640, 0.0
        %v658 = vld [vmem:[#allocation2] sm:$0x1]
        %v659 = vrot.slane %v656, 4
        %v660 = vadd.f32 %v656, %v659
        %v661 = vrot.slane %v660, 2
        %v662 = vadd.f32 %v660, %v661
        %v663 = vrot.slane %v662, 1
        %v664 = vadd.f32 %v662, %v663
        %v665 = vadd.f32 %v658, %v664
        %666 = vst [vmem:[#allocation2] sm:$0x1] %v665
        %v667 = vld [vmem:[#allocation2 + $0x1] sm:$0x1]
        %v668 = vsel %vm654, 1, 0
        %v669 = vcvt.s32.f32 %v668
        %v670 = vrot.slane %v669, 4
        %v671 = vadd.f32 %v669, %v670
        %v672 = vrot.slane %v671, 2
        %v673 = vadd.f32 %v671, %v672
        %v674 = vrot.slane %v673, 1
        %v675 = vadd.f32 %v673, %v674
        %v676 = vadd.f32 %v667, %v675
        %677 = vst [vmem:[#allocation2 + $0x1] sm:$0x1] %v676
        %v678 = vld [vmem:[#allocation2 + $0x2] sm:$0x1]
        %v679 = vrot.slane %v657, 4
        %v680 = vadd.f32 %v657, %v679
        %v681 = vrot.slane %v680, 2
        %v682 = vadd.f32 %v680, %v681
        %v683 = vrot.slane %v682, 1
        %v684 = vadd.f32 %v682, %v683
        %v685 = vadd.f32 %v678, %v684
        %686 = vst [vmem:[#allocation2 + $0x2] sm:$0x1] %v685
        %v687 = vld [vmem:[#allocation2 + $0x3] sm:$0x1]
        %v688 = vsel %vm655, 1, 0
        %v689 = vcvt.s32.f32 %v688
        %v690 = vrot.slane %v689, 4
        %v691 = vadd.f32 %v689, %v690
        %v692 = vrot.slane %v691, 2
        %v693 = vadd.f32 %v691, %v692
        %v694 = vrot.slane %v693, 1
        %v695 = vadd.f32 %v693, %v694
        %v696 = vadd.f32 %v687, %v695
        %697 = vst [vmem:[#allocation2 + $0x3] sm:$0x1] %v696
        // Predicated region
        $region85: #{tpu_custom_call.1} parent=51 // pred_check
          %p698 = pneg %p598
        $region86: #{tpu_custom_call.1} parent=51 // pred_check_branch
          %700 = sbr.rel (%p698) target = $region88
        $region87: #{tpu_custom_call.1} parent=51 // pred_region
          %v701 = vld [vmem:[#allocation2] sm:$0xf]
          %702 = vst [vmem:[%s584] sm:$0xf] %v701
        $region88: #{tpu_custom_call.1} parent=51 // pred_fallthru
          _
        %s703 = sand.u32 %s278, 1
        %s704 = scalar_lea.sflag [#allocation5], %s703
        %s705 = sand.u32 %s278, 1
        %s706 = smul.addr %s705, 4
        %s707 = scalar_lea.vmem [#allocation15], %s706
        // Predicated region
        $region89: #{tpu_custom_call.1} parent=51 // pred_check
          %p708 = pneg %p288
        $region90: #{tpu_custom_call.1} parent=51 // pred_check_branch
          %710 = sbr.rel (%p708) target = $region92
        $region91: #{tpu_custom_call.1} parent=51 // pred_region
          %s712 = ssub.s32 64, 64
          %713 = vsyncadd %s704, %s712
          %s714 = smul.addr %s38, 64
          %s715 = scalar_lea.hbm %s8, %s714
          %s717 = sshll.u32 %s707, 4
          %s718 = int_to_ptr.vmem [resolvable:$true] %s717
          %720 = dma.vmem_to_hbm [thread:$0]  %s718, 64, %s715, %s704
        $region92: #{tpu_custom_call.1} parent=51 // pred_fallthru
          _
      $region52: #{tpu_custom_call.1} parent=5 // pred_fallthru
        _
      %p721 = scmp.le.s32.totalorder 2, %s29
      // Predicated region
      $region93: #{tpu_custom_call.1} parent=5 // pred_check
        %p722 = pneg %p721
      $region94: #{tpu_custom_call.1} parent=5 // pred_check_branch
        %724 = sbr.rel (%p722) target = $region96
      $region95: #{tpu_custom_call.1} parent=5 // pred_region
        %s725 = ssub.s32 %s29, 2
        // Predicated region
        $region97: #{tpu_custom_call.1} parent=95 // pred_check
          %p726 = pneg %p294
        $region98: #{tpu_custom_call.1} parent=95 // pred_check_branch
          %728 = sbr.rel (%p726) target = $region100
        $region99: #{tpu_custom_call.1} parent=95 // pred_region
          %s729 = sand.u32 %s279, 1
          %s730 = scalar_lea.sflag [#allocation5], %s729
          %s731 = sand.u32 %s279, 1
          %s732 = smul.addr %s731, 4
          %s733 = scalar_lea.vmem [#allocation15], %s732
          %734 = dma.done %s730, 64
        $region100: #{tpu_custom_call.1} parent=95 // pred_fallthru
          _
      $region96: #{tpu_custom_call.1} parent=5 // pred_fallthru
        _
    $region6: #{tpu_custom_call.1} parent=1 // loop_footer
      %s33 = sadd.s32 1, %s29
    $region7: #{tpu_custom_call.1} parent=1 // loop_footer_branch
      %28 = sbr.rel target = $region3
    $region8: #{tpu_custom_call.1} parent=1 // loop_exit
      _
    %735 = vsyncpa [#allocation4], 1
    %s736 = scalar_lea.sflag [#allocation4], 1
    %737 = vsyncpa %s736, 1
    %738 = vsyncpa [#allocation7], 1
    %s739 = scalar_lea.sflag [#allocation7], 1
    %740 = vsyncpa %s739, 1
    %741 = vsyncpa [#allocation10], 1
    %s742 = scalar_lea.sflag [#allocation10], 1
    %743 = vsyncpa %s742, 1
    %744 = vsyncpa [#allocation13], 1
    %s745 = scalar_lea.sflag [#allocation13], 1
    %746 = vsyncpa %s745, 1
    %747 = vsyncpa [#allocation5], 1
    %s748 = scalar_lea.sflag [#allocation5], 1
    %749 = vsyncpa %s748, 1

</llo_original>
